<compile_context>
chip_gen: v6e
topology: v6e:2x2x1
jax: 0.10.0
libtpu: 0.0.40
codegen_flags: <defaults>
</compile_context>

<pallas_src>
import jax
import jax.numpy as jnp
from jax.experimental import pallas as pl
from jax.experimental.pallas import tpu as pltpu


# ---------------------------------------------------------------------------
# Kernels
# ---------------------------------------------------------------------------

def _vpu_score_kernel(x_ref, w_ref, o_ref, acc_ref):
    """output_dim == 1: VPU multiply + XLU lane reduce, K-tiled over D."""
    k = pl.program_id(1)

    @pl.when(k == 0)
    def _init():
        acc_ref[...] = jnp.zeros_like(acc_ref)

    x = x_ref[...].astype(jnp.float32)          # (tm, tk)
    w = w_ref[...].astype(jnp.float32)          # (1, tk), broadcast over rows
    acc_ref[...] += jnp.sum(x * w, axis=-1, keepdims=True)

    @pl.when(k == pl.num_programs(1) - 1)
    def _finalize():
        o_ref[...] = acc_ref[...].astype(o_ref.dtype)


def _resident_score_kernel(x_ref, w_ref, o_ref):
    """Weight-resident MXU path: one trans_b contraction per batch tile.

    The weight block index is constant across the grid, so Pallas DMAs it
    once and keeps it resident in VMEM for every batch tile.
    """
    o_ref[...] = jax.lax.dot_general(
        x_ref[...], w_ref[...],
        dimension_numbers=(((1,), (1,)), ((), ())),   # x @ W^T
        preferred_element_type=jnp.float32,
    ).astype(o_ref.dtype)


def _tiled_score_kernel(x_ref, w_ref, o_ref, acc_ref):
    """Fallback tiled MXU path with K-axis accumulation (weight > VMEM)."""
    @pl.when(pl.program_id(2) == 0)
    def _init():
        acc_ref[...] = jnp.zeros_like(acc_ref)

    acc_ref[...] += jax.lax.dot_general(
        x_ref[...], w_ref[...],
        dimension_numbers=(((1,), (1,)), ((), ())),   # (tm,tk) x (tn,tk)^T
        preferred_element_type=jnp.float32,
    )

    @pl.when(pl.program_id(2) == pl.num_programs(2) - 1)
    def _finalize():
        o_ref[...] = acc_ref[...].astype(o_ref.dtype)


# ---------------------------------------------------------------------------
# Helpers
# ---------------------------------------------------------------------------

def _vmem_budget_bytes():
    """~75% of per-core VMEM: ~48 MiB on v7x (64 MiB/TC), ~96 MiB on v5e/v6e."""
    cap = 64 * 1024 * 1024
    try:
        cap = int(getattr(pltpu.get_tpu_info(), "vmem_capacity_bytes", cap))
    except Exception:
        pass
    return min((cap * 3) // 4, 100 * 1024 * 1024)


def _pick_tile(dim, target, align):
    """Largest multiple of `align` that divides `dim` and is <= target.

    Requires dim % align == 0 (callers pad first); never silently falls back
    to an unaligned full dimension.
    """
    assert dim % align == 0 and dim >= align
    t = min(dim, max(align, (target // align) * align))
    while dim % t:
        t -= align
    return t


def _pad_axis(a, axis, mult):
    pad = (-a.shape[axis]) % mult
    if pad == 0:
        return a
    widths = [(0, 0)] * a.ndim
    widths[axis] = (0, pad)
    return jnp.pad(a, widths)


# ---------------------------------------------------------------------------
# Wrapper
# ---------------------------------------------------------------------------

def combined_score_head(x, w_learnable, w_prior, *,
                        compute_dtype="auto", force_tiled=False):
    """Pallas forward for CombinedScoreHead.

    x:           (B, D)
    w_learnable: (O, D)   -- torch.nn.Linear.weight layout
    w_prior:     (O, D)

    compute_dtype: "auto" (f32 on the O==1 VPU path, bf16 operands on the MXU
      paths with f32 accumulation), an explicit dtype, or None (keep x dtype).
      Output always keeps x's original dtype.
    force_tiled: force the K-accumulation fallback (testing / huge weights).
    """
    B, D = x.shape
    O, D2 = w_learnable.shape
    assert D2 == D and w_prior.shape == (O, D)

    out_dtype = x.dtype
    budget = _vmem_budget_bytes()

    # Fold the two heads; sum in f32, cast afterwards.
    w_sum = w_learnable.astype(jnp.float32) + w_prior.astype(jnp.float32)

    if compute_dtype == "auto":
        x_dtype = jnp.float32 if O == 1 else jnp.bfloat16
    elif compute_dtype is None:
        x_dtype = x.dtype
    else:
        x_dtype = compute_dtype
    x_c = x.astype(x_dtype)
    w_c = w_sum.astype(x_dtype)

    bx = jnp.dtype(x_dtype).itemsize
    bo = jnp.dtype(out_dtype).itemsize

    # Batch rows must be sublane (8) aligned for clean tiles; pad & slice.
    x_c = _pad_axis(x_c, 0, 8)
    Bp = x_c.shape[0]

    # ------------------------- O == 1: VPU path -----------------------------
    if O == 1 and not force_tiled:
        Dp = D
        if D % 128 != 0 and D > 4096:
            x_c = _pad_axis(x_c, 1, 128)
            w_c = _pad_axis(w_c, 1, 128)
            Dp = x_c.shape[1]
        if Dp % 128 == 0:
            tk = _pick_tile(Dp, 2048, 128)
        else:
            tk = Dp                      # single full-D tile (small D)
        # x tile is the dominant VMEM consumer (double-buffered).
        tm_cap = max(8, (budget // 3) // (2 * tk * bx))
        tm = _pick_tile(Bp, min(tm_cap, 4096), 8)
        grid = (Bp // tm, Dp // tk)      # reduction axis last

        out = pl.pallas_call(
            _vpu_score_kernel,
            out_shape=jax.ShapeDtypeStruct((Bp, 1), out_dtype),
            grid=grid,
            in_specs=[
                pl.BlockSpec((tm, tk), lambda i, k: (i, k)),
                pl.BlockSpec((1, tk), lambda i, k: (0, k)),
            ],
            out_specs=pl.BlockSpec((tm, 1), lambda i, k: (i, 0)),
            scratch_shapes=[pltpu.VMEM((tm, 1), jnp.float32)],
            compiler_params=pltpu.CompilerParams(
                dimension_semantics=("parallel", "arbitrary"),
                vmem_limit_bytes=budget,
            ),
            cost_estimate=pl.CostEstimate(
                flops=2 * Bp * Dp,
                transcendentals=0,
                bytes_accessed=Bp * Dp * bx + Dp * bx + Bp * bo,
            ),
        )(x_c, w_c)
        return out[:B]

    # ------------------------- O > 1: MXU paths -----------------------------
    # Lane-dense output: pad O up to a multiple of 128 (zero weight rows).
    w_c = _pad_axis(w_c, 0, 128)
    Op = w_c.shape[0]
    w_bytes = Op * D * bx
    flops = 2 * Bp * D * Op
    bytes_accessed = Bp * D * bx + Op * D * bx + Bp * Op * bo

    resident_ok = (not force_tiled) and (2 * w_bytes <= budget // 2)

    if resident_ok:
        # Weight fully VMEM-resident (constant block index => single DMA);
        # grid only over batch tiles, no K accumulation needed.
        per_row = 2 * (D * bx + Op * bo)            # double-buffered x + out
        tm_cap = max(8, (budget - 2 * w_bytes - (1 << 20)) // per_row)
        tm = _pick_tile(Bp, min(tm_cap, 2048), 8)
        grid = (Bp // tm,)

        out = pl.pallas_call(
            _resident_score_kernel,
            out_shape=jax.ShapeDtypeStruct((Bp, Op), out_dtype),
            grid=grid,
            in_specs=[
                pl.BlockSpec((tm, D), lambda i: (i, 0)),
                pl.BlockSpec((Op, D), lambda i: (0, 0)),   # resident weight
            ],
            out_specs=pl.BlockSpec((tm, Op), lambda i: (i, 0)),
            compiler_params=pltpu.CompilerParams(
                dimension_semantics=("parallel",),
                vmem_limit_bytes=budget,
            ),
            cost_estimate=pl.CostEstimate(
                flops=flops, transcendentals=0,
                bytes_accessed=bytes_accessed),
        )(x_c, w_c)
        return out[:B, :O]

    # Fallback: weight too large for VMEM residency -> K-accumulation grid.
    # K tiles need 128 alignment; pad D (zero contributions) if necessary.
    x_c = _pad_axis(x_c, 1, 128)
    w_c = _pad_axis(w_c, 1, 128)
    Dp = x_c.shape[1]

    tn = _pick_tile(Op, 512, 128)
    tk = _pick_tile(Dp, 2048 if bx <= 2 else 1024, 128)
    tm = _pick_tile(Bp, 512, 8)
    # Shrink tm if the double-buffered footprint would exceed the budget.
    while tm > 8 and (2 * (tm * tk * bx + tn * tk * bx + tm * tn * bo)
                      + tm * tn * 4) > budget:
        tm = _pick_tile(Bp, tm - 8, 8)
    grid = (Bp // tm, Op // tn, Dp // tk)          # reduction axis last

    out = pl.pallas_call(
        _tiled_score_kernel,
        out_shape=jax.ShapeDtypeStruct((Bp, Op), out_dtype),
        grid=grid,
        in_specs=[
            pl.BlockSpec((tm, tk), lambda i, j, k: (i, k)),
            pl.BlockSpec((tn, tk), lambda i, j, k: (j, k)),
        ],
        out_specs=pl.BlockSpec((tm, tn), lambda i, j, k: (i, j)),
        scratch_shapes=[pltpu.VMEM((tm, tn), jnp.float32)],
        compiler_params=pltpu.CompilerParams(
            dimension_semantics=("parallel", "parallel", "arbitrary"),
            vmem_limit_bytes=budget,
        ),
        cost_estimate=pl.CostEstimate(
            flops=flops, transcendentals=0, bytes_accessed=bytes_accessed),
    )(x_c, w_c)
    return out[:B, :O]


# ---------------------------------------------------------------------------
# Demo / self-check
# ---------------------------------------------------------------------------

if __name__ == "__main__":
    key = jax.random.PRNGKey(0)
    keys = jax.random.split(key, 9)
    hp = jax.lax.Precision.HIGHEST

    # 1) Module-default shape (regression head, output_dim = 1): VPU path.
    batch, input_dim, output_dim = 8, 32, 1
    x = jax.random.normal(keys[0], (batch, input_dim), dtype=jnp.float32)
    bound = 1.0 / jnp.sqrt(input_dim)
    w_l = jax.random.uniform(keys[1], (output_dim, input_dim), jnp.float32,
                             -bound, bound)
    w_p = jax.random.uniform(keys[2], (output_dim, input_dim), jnp.float32,
                             -bound, bound)
    out = jax.block_until_ready(combined_score_head(x, w_l, w_p))
    ref = (jnp.dot(x, w_l.T, precision=hp) + jnp.dot(x, w_p.T, precision=hp))
    assert out.shape == (batch, output_dim)
    assert jnp.allclose(out, ref, atol=1e-5, rtol=1e-5)

    # 2) Wide head: weight-resident MXU path (bf16 operands, f32 accumulate).
    B2, D2, O2 = 256, 1024, 256
    x2 = jax.random.normal(keys[3], (B2, D2), dtype=jnp.float32)
    b2 = 1.0 / jnp.sqrt(D2)
    w_l2 = jax.random.uniform(keys[4], (O2, D2), jnp.float32, -b2, b2)
    w_p2 = jax.random.uniform(keys[5], (O2, D2), jnp.float32, -b2, b2)
    out2 = jax.block_until_ready(combined_score_head(x2, w_l2, w_p2))
    ref2 = (jnp.dot(x2, w_l2.T, precision=hp)
            + jnp.dot(x2, w_p2.T, precision=hp))
    assert out2.shape == (B2, O2)
    assert jnp.allclose(out2, ref2, atol=5e-2, rtol=5e-2)

    # 3) Ragged shape, forced tiled fallback: exercises B/O/D padding and the
    #    K-axis accumulation (pl.when init/finalize) path.
    B3, D3, O3 = 250, 4100, 200
    x3 = jax.random.normal(keys[6], (B3, D3), dtype=jnp.float32)
    b3 = 1.0 / jnp.sqrt(D3)
    w_l3 = jax.random.uniform(keys[7], (O3, D3), jnp.float32, -b3, b3)
    w_p3 = jax.random.uniform(keys[8], (O3, D3), jnp.float32, -b3, b3)
    out3 = jax.block_until_ready(
        combined_score_head(x3, w_l3, w_p3, force_tiled=True))
    ref3 = (jnp.dot(x3, w_l3.T, precision=hp)
            + jnp.dot(x3, w_p3.T, precision=hp))
    assert out3.shape == (B3, O3)
    assert jnp.allclose(out3, ref3, atol=5e-2, rtol=5e-2)

    print("KERNEL_OK")
</pallas_src>

<mosaic_0001>
module attributes {stable_mosaic.version = 11 : i64} {
  func.func @_vpu_score_kernel(%arg0: i32, %arg1: i32, %arg2: memref<8x32xf32, #tpu.memory_space<vmem>>, %arg3: memref<1x32xf32, #tpu.memory_space<vmem>>, %arg4: memref<8x1xf32, #tpu.memory_space<vmem>>, %arg5: memref<8x1xf32, #tpu.memory_space<vmem>>) attributes {dimension_semantics = [#tpu.dimension_semantics<parallel>, #tpu.dimension_semantics<arbitrary>], iteration_bounds = array<i64: 1, 1>, scalar_prefetch = 0 : i64, scratch_operands = 1 : i64, tpu.core_type = #tpu.core_type<tc>, window_params = [{transform_indices = @transform_0, window_bounds = array<i64: 8, 32>}, {transform_indices = @transform_1, window_bounds = array<i64: 1, 32>}, {transform_indices = @transform_2, window_bounds = array<i64: 8, 1>}]} {
    %c0_i32 = arith.constant 0 : i32
    %0 = arith.cmpi eq, %arg1, %c0_i32 : i32
    %1 = arith.extui %0 : i1 to i32
    %c0_i32_0 = arith.constant 0 : i32
    %2 = arith.cmpi ne, %1, %c0_i32_0 : i32
    scf.if %2 {
      %cst_10 = arith.constant 0.000000e+00 : f32
      %15 = vector.broadcast %cst_10 : f32 to vector<8x1xf32>
      %c0_11 = arith.constant 0 : index
      %c0_12 = arith.constant 0 : index
      %16 = vector.load %arg5[%c0_11, %c0_12] : memref<8x1xf32, #tpu.memory_space<vmem>>, vector<8x1xf32>
      tpu.vector_store %arg5[%c0_11, %c0_12], %15 {strides = array<i32>} : memref<8x1xf32, #tpu.memory_space<vmem>>, vector<8x1xf32>,
    } else {
    }
    %c0 = arith.constant 0 : index
    %c0_1 = arith.constant 0 : index
    %3 = vector.load %arg2[%c0, %c0_1] : memref<8x32xf32, #tpu.memory_space<vmem>>, vector<8x32xf32>
    %c0_2 = arith.constant 0 : index
    %c0_3 = arith.constant 0 : index
    %4 = vector.load %arg3[%c0_2, %c0_3] : memref<1x32xf32, #tpu.memory_space<vmem>>, vector<1x32xf32>
    %c0_4 = arith.constant 0 : index
    %c0_5 = arith.constant 0 : index
    %5 = vector.load %arg5[%c0_4, %c0_5] : memref<8x1xf32, #tpu.memory_space<vmem>>, vector<8x1xf32>
    %6 = vector.broadcast %4 : vector<1x32xf32> to vector<8x32xf32>
    %7 = arith.mulf %3, %6 : vector<8x32xf32>
    %cst = arith.constant dense<0.000000e+00> : vector<8xf32>
    %8 = vector.multi_reduction <add>, %7, %cst [1] : vector<8x32xf32> to vector<8xf32>
    %9 = vector.shape_cast %8 : vector<8xf32> to vector<8x1xf32>
    %10 = arith.addf %5, %9 : vector<8x1xf32>
    %c0_6 = arith.constant 0 : index
    %c0_7 = arith.constant 0 : index
    %11 = vector.load %arg5[%c0_6, %c0_7] : memref<8x1xf32, #tpu.memory_space<vmem>>, vector<8x1xf32>
    tpu.vector_store %arg5[%c0_6, %c0_7], %10 {strides = array<i32>} : memref<8x1xf32, #tpu.memory_space<vmem>>, vector<8x1xf32>,
    %c0_i32_8 = arith.constant 0 : i32
    %12 = arith.cmpi eq, %arg1, %c0_i32_8 : i32
    %13 = arith.extui %12 : i1 to i32
    %c0_i32_9 = arith.constant 0 : i32
    %14 = arith.cmpi ne, %13, %c0_i32_9 : i32
    scf.if %14 {
      %c0_10 = arith.constant 0 : index
      %c0_11 = arith.constant 0 : index
      %15 = vector.load %arg5[%c0_10, %c0_11] : memref<8x1xf32, #tpu.memory_space<vmem>>, vector<8x1xf32>
      %c0_12 = arith.constant 0 : index
      %c0_13 = arith.constant 0 : index
      %16 = vector.load %arg4[%c0_12, %c0_13] : memref<8x1xf32, #tpu.memory_space<vmem>>, vector<8x1xf32>
      tpu.vector_store %arg4[%c0_12, %c0_13], %15 {strides = array<i32>} : memref<8x1xf32, #tpu.memory_space<vmem>>, vector<8x1xf32>,
    } else {
    }
    return
  }
  func.func @transform_0(%arg0: i32, %arg1: i32) -> (i32, i32) {
    %c0_i32 = arith.constant 0 : i32
    return %arg0, %arg1 : i32, i32
  }
  func.func @transform_1(%arg0: i32, %arg1: i32) -> (i32, i32) {
    %c0_i32 = arith.constant 0 : i32
    %c0_i32_0 = arith.constant 0 : i32
    return %c0_i32, %arg1 : i32, i32
  }
  func.func @transform_2(%arg0: i32, %arg1: i32) -> (i32, i32) {
    %c0_i32 = arith.constant 0 : i32
    %c0_i32_0 = arith.constant 0 : i32
    return %arg0, %c0_i32 : i32, i32
  }
}

</mosaic_0001>

<llo_original>
// kernel: tpu_custom_call.1
$region0: #{tpu_custom_call.1}
  #allocation0 [shape = 'u32[]', space=smem, size = 0x4, offset = 0x4, fixed_abs, tag = 'smem constant byte address 0x4 - core index']
  #allocation1 [shape = 'u32[144,128]{1,0:T(1,128)}', space=vmem, size = 0x12000, scoped, tag = 'internal scratch']
  #allocation2 [shape = 'f32[8,1]{1,0:T(8,128)}', space=vmem, size = 0x1000, scoped, tag = 'scratch operand']
  %s0 = inlined_call_operand.hbm [shape: f32[8,32], index: 0, kind: input, shape index: {}]
  %s1 = inlined_call_operand.vmem [shape: f32[1,32], index: 1, kind: input, shape index: {}]
  %s2 = inlined_call_operand.vmem [shape: f32[8,1], index: 2, kind: output, shape index: {}]
  %s3 = sld [smem:[#allocation0]]
  $region30: #{tpu_custom_call.1} parent=0
    _
  %s5 = ssub.s32 1, %s3
  %s6 = scalar_select 0, %s5, %s3
  $region1: #{tpu_custom_call.1} parent=0
    #allocation3 [shape = 'u8[4096]{0}', space=vmem, size = 0x1000, scoped, tag = 'input window, operand 0, single buffered']
    #allocation4 [shape = 's32[1]{0}', space=sflag, size = 0x4, scoped, tag = 'scoped memory for tpu_custom_call.1']
    %7 = vsyncpa [#allocation4], 0
    // Predicated region
    $region2: #{tpu_custom_call.1} parent=1 // pred_check
      _
    $region3: #{tpu_custom_call.1} parent=1 // pred_check_branch
      %9 = sbr.rel (0) target = $region5
    $region4: #{tpu_custom_call.1} parent=1 // pred_region
      %s11 = ssub.s32 128, 128
      %12 = vsyncadd [#allocation4], %s11
      %s14 = sshll.u32 [#allocation3], 4
      %s15 = int_to_ptr.vmem [resolvable:$true] %s14
      %17 = dma.hbm_to_vmem [thread:$0]  %s0, 128, %s15, [#allocation4]
    $region5: #{tpu_custom_call.1} parent=1 // pred_fallthru
      _
    // Predicated region
    $region6: #{tpu_custom_call.1} parent=1 // pred_check
      _
    $region7: #{tpu_custom_call.1} parent=1 // pred_check_branch
      %19 = sbr.rel (0) target = $region9
    $region8: #{tpu_custom_call.1} parent=1 // pred_region
      _
    $region9: #{tpu_custom_call.1} parent=1 // pred_fallthru
      _
    // Predicated region
    $region10: #{tpu_custom_call.1} parent=1 // pred_check
      _
    $region11: #{tpu_custom_call.1} parent=1 // pred_check_branch
      %21 = sbr.rel (0) target = $region13
    $region12: #{tpu_custom_call.1} parent=1 // pred_region
      %22 = dma.done [#allocation4], 128
    $region13: #{tpu_custom_call.1} parent=1 // pred_fallthru
      _
    %p23 = scmp.eq.s32.totalorder 0, 0
    // Predicated region
    $region14: #{tpu_custom_call.1} parent=1 // pred_check
      %p24 = pneg %p23
    $region15: #{tpu_custom_call.1} parent=1 // pred_check_branch
      %26 = sbr.rel (%p24) target = $region17
    $region16: #{tpu_custom_call.1} parent=1 // pred_region
      %vm27 = vcmask 7168
      %28 = vst.msk [vmem:[#allocation2] sm:$0xff] %vm27, 0.0
    $region17: #{tpu_custom_call.1} parent=1 // pred_fallthru
      _
    %v29 = vld [vmem:[#allocation3] sm:$0xff]
    %v30 = vld [vmem:[%s1] sm:$0x1]
    %v31 = vld [vmem:[#allocation2] sm:$0xff]
    %v33 = vlaneseq
    %v34 = vshrl.u32 %v33, 7
    %v35 = vsub.s32 0, %v34
    %v36 = vrot.slane %v30, %v35
    %v38 = vmul.f32 %v29, %v36
    %vm39 = vcmask 261120
    %v40 = vsel %vm39, %v38, 0.0
    %41 = vadd.xlane.f32.xlu0 %v40
    %v42 = vpop.xlane.xlu0 %41
    %v43 = vadd.f32 %v31, %v42
    %vm44 = vcmask 7168
    %45 = vst.msk [vmem:[#allocation2] sm:$0xff] %vm44, %v43
    // Predicated region
    $region18: #{tpu_custom_call.1} parent=1 // pred_check
      %p46 = pneg %p23
    $region19: #{tpu_custom_call.1} parent=1 // pred_check_branch
      %48 = sbr.rel (%p46) target = $region21
    $region20: #{tpu_custom_call.1} parent=1 // pred_region
      %v49 = vld [vmem:[#allocation2] sm:$0xff]
      %50 = vst.msk [vmem:[%s2] sm:$0xff] %vm44, %v49
    $region21: #{tpu_custom_call.1} parent=1 // pred_fallthru
      _
    // Predicated region
    $region22: #{tpu_custom_call.1} parent=1 // pred_check
      _
    $region23: #{tpu_custom_call.1} parent=1 // pred_check_branch
      %52 = sbr.rel (0) target = $region25
    $region24: #{tpu_custom_call.1} parent=1 // pred_region
      _
    $region25: #{tpu_custom_call.1} parent=1 // pred_fallthru
      _
    // Predicated region
    $region26: #{tpu_custom_call.1} parent=1 // pred_check
      _
    $region27: #{tpu_custom_call.1} parent=1 // pred_check_branch
      %54 = sbr.rel (0) target = $region29
    $region28: #{tpu_custom_call.1} parent=1 // pred_region
      _
    $region29: #{tpu_custom_call.1} parent=1 // pred_fallthru
      _
    %55 = vsyncpa [#allocation4], 1

</llo_original>
